<compile_context>
chip_gen: v7x
topology: tpu7x:2x2x1
jax: 0.10.0
libtpu: 0.0.40
codegen_flags: <defaults>
</compile_context>

<pallas_src>
import functools

import jax
import jax.numpy as jnp
from jax import lax
from jax.experimental import pallas as pl
from jax.experimental.pallas import tpu as pltpu

LANE = 128


def _round_up(x, m):
    return (x + m - 1) // m * m


def mlp_kernel(*refs, num_layers, alpha, eps, disable_last):
    """Fused MLP: per layer y = prelu(batchnorm(y @ W)); all intermediates stay in VMEM.

    refs = (x_ref, [w_ref, gb_ref] * num_layers, out_ref)
      w_ref  : (idim_pad, odim_pad) bf16 weights (lane-dense, zero-padded)
      gb_ref : (2, odim_pad) f32  -- row 0 = BN gamma, row 1 = BN beta
    """
    x_ref = refs[0]
    out_ref = refs[-1]

    y = x_ref[...]                                   # f32 activations (B, idim_pad)
    inv_b = 1.0 / y.shape[0]                         # compile-time constant

    for l in range(num_layers):                      # unrolled at trace time
        w_ref = refs[1 + 2 * l]
        gb_ref = refs[2 + 2 * l]

        # Linear (bias omitted: exactly cancelled by the BN mean subtraction).
        # bf16 operands feed the MXU natively; accumulate in f32.
        y = jnp.dot(y.astype(jnp.bfloat16), w_ref[...],
                    preferred_element_type=jnp.float32)

        # BatchNorm1d (training-mode batch stats), centered variance.
        # Normalize + affine is a single FMA pass: y = (y - mean) * scale + beta.
        gb = gb_ref[...]
        mean = jnp.sum(y, axis=0, keepdims=True) * inv_b
        d = y - mean
        var = jnp.sum(d * d, axis=0, keepdims=True) * inv_b       # biased variance
        scale = gb[0:1, :] * lax.rsqrt(var + eps)                  # (1, odim_pad), EUP
        y = d * scale + gb[1:2, :]

        # PReLU (single shared slope), fused onto the same elementwise result.
        if not (disable_last and l == num_layers - 1):
            y = jnp.where(y > 0.0, y, alpha * y)

    out_ref[...] = y.astype(out_ref.dtype)


def mlp_forward(x, layers, *, alpha, disable_last, eps=1e-5):
    """Run the whole MLP in one pallas_call.

    layers = [(W_bf16 padded to (idim_pad, odim_pad), gb f32 (2, odim_pad), odim), ...]
    """
    batch, idim = x.shape
    num_layers = len(layers)
    idim_pad = layers[0][0].shape[0]
    odim_last = layers[-1][2]
    odim_last_pad = layers[-1][0].shape[1]

    # Lane-dense input: zero-pad the feature dim up to a multiple of 128.
    x_pad = jnp.pad(x.astype(jnp.float32), ((0, 0), (0, idim_pad - idim)))

    kernel = functools.partial(
        mlp_kernel, num_layers=num_layers, alpha=alpha, eps=eps,
        disable_last=disable_last)

    full = lambda shape: pl.BlockSpec(shape, lambda i: (0, 0))

    inputs = [x_pad]
    in_specs = [full((batch, idim_pad))]
    flops = 0
    transcendentals = 0
    bytes_accessed = x_pad.size * 4 + batch * odim_last_pad * 4
    max_odim_pad = 0
    for w, gb, _ in layers:
        inputs += [w, gb]
        in_specs += [full(w.shape), full(gb.shape)]
        flops += 2 * batch * w.shape[0] * w.shape[1]
        transcendentals += w.shape[1]                       # rsqrt per feature
        bytes_accessed += w.size * 2 + gb.size * 4          # bf16 weights, f32 gb
        max_odim_pad = max(max_odim_pad, w.shape[1])

    # Explicit VMEM budget (v7x: 64 MiB physical). Inputs/outputs are double-buffered
    # by the pipeline; add slack for the f32 activation intermediates.
    vmem_needed = 2 * bytes_accessed + 4 * batch * max_odim_pad * 4
    vmem_limit = int(min(max(vmem_needed, 4 << 20), 64 << 20))

    out = pl.pallas_call(
        kernel,
        out_shape=jax.ShapeDtypeStruct((batch, odim_last_pad), jnp.float32),
        grid=(1,),
        in_specs=in_specs,
        out_specs=full((batch, odim_last_pad)),
        compiler_params=pltpu.CompilerParams(
            dimension_semantics=("arbitrary",),
            vmem_limit_bytes=vmem_limit),
        cost_estimate=pl.CostEstimate(
            flops=flops,
            transcendentals=transcendentals,
            bytes_accessed=bytes_accessed),
    )(*inputs)

    # Slice the zero-padded output columns back off.
    return out[:, :odim_last]


class MLPPallas:
    """MLP(dims, init=0.25, disable_last=True) with deterministic parameter init."""

    def __init__(self, dims, key, init=0.25, disable_last=True):
        self.alpha = float(init)
        self.disable_last = bool(disable_last)
        self.layers = []
        keys = jax.random.split(key, len(dims) - 1)
        for i in range(1, len(dims)):
            idim, odim = dims[i - 1], dims[i]
            idim_pad, odim_pad = _round_up(idim, LANE), _round_up(odim, LANE)
            kw, _ = jax.random.split(keys[i - 1])
            bound = 1.0 / (idim ** 0.5)
            # nn.Linear-style uniform init (deterministic via fixed key).  The linear
            # bias is not materialized: it is cancelled by the BN mean subtraction.
            w = jax.random.uniform(kw, (idim, odim), jnp.float32, -bound, bound)
            # Lane-dense zero-padded bf16 weights (native MXU dtype, half the DMA).
            w_pad = jnp.zeros((idim_pad, odim_pad), jnp.float32)
            w_pad = w_pad.at[:idim, :odim].set(w).astype(jnp.bfloat16)
            # BatchNorm1d gamma (=1) / beta (=0) concatenated into one (2, odim_pad).
            gb = jnp.concatenate(
                [jnp.ones((1, odim_pad), jnp.float32),
                 jnp.zeros((1, odim_pad), jnp.float32)], axis=0)
            self.layers.append((w_pad, gb, odim))

    def __call__(self, x):
        return mlp_forward(x, self.layers, alpha=self.alpha,
                           disable_last=self.disable_last)


if __name__ == "__main__":
    key = jax.random.PRNGKey(0)
    k_x, k_p = jax.random.split(key)

    batch = 8
    dims = [32, 64, 16]          # MLP([32, 64, 16])
    x = jax.random.normal(k_x, (batch, dims[0]), jnp.float32)

    mlp = MLPPallas(dims, k_p, init=0.25, disable_last=True)
    out = jax.block_until_ready(mlp(x))

    assert out.shape == (batch, dims[-1]), out.shape
    assert bool(jnp.all(jnp.isfinite(out)))
    print("KERNEL_OK")
</pallas_src>

<mosaic_0001>
module attributes {stable_mosaic.version = 11 : i64} {
  func.func @mlp_kernel(%arg0: i32, %arg1: memref<8x128xf32, #tpu.memory_space<vmem>>, %arg2: memref<128x128xbf16, #tpu.memory_space<vmem>>, %arg3: memref<2x128xf32, #tpu.memory_space<vmem>>, %arg4: memref<128x128xbf16, #tpu.memory_space<vmem>>, %arg5: memref<2x128xf32, #tpu.memory_space<vmem>>, %arg6: memref<8x128xf32, #tpu.memory_space<vmem>>) attributes {dimension_semantics = [#tpu.dimension_semantics<arbitrary>], iteration_bounds = array<i64: 1>, scalar_prefetch = 0 : i64, scratch_operands = 0 : i64, tpu.core_type = #tpu.core_type<tc>, window_params = [{pipeline_mode = #tpu.pipeline_mode<synchronous>, transform_indices = @transform_0, window_bounds = array<i64: 8, 128>}, {pipeline_mode = #tpu.pipeline_mode<synchronous>, transform_indices = @transform_1, window_bounds = array<i64: 128, 128>}, {pipeline_mode = #tpu.pipeline_mode<synchronous>, transform_indices = @transform_2, window_bounds = array<i64: 2, 128>}, {pipeline_mode = #tpu.pipeline_mode<synchronous>, transform_indices = @transform_3, window_bounds = array<i64: 128, 128>}, {pipeline_mode = #tpu.pipeline_mode<synchronous>, transform_indices = @transform_4, window_bounds = array<i64: 2, 128>}, {pipeline_mode = #tpu.pipeline_mode<synchronous>, transform_indices = @transform_5, window_bounds = array<i64: 8, 128>}]} {
    %c0 = arith.constant 0 : index
    %c0_0 = arith.constant 0 : index
    %0 = vector.load %arg1[%c0, %c0_0] : memref<8x128xf32, #tpu.memory_space<vmem>>, vector<8x128xf32>
    %1 = arith.truncf %0 : vector<8x128xf32> to vector<8x128xbf16>
    %c0_1 = arith.constant 0 : index
    %c0_2 = arith.constant 0 : index
    %2 = vector.load %arg2[%c0_1, %c0_2] : memref<128x128xbf16, #tpu.memory_space<vmem>>, vector<128x128xbf16>
    %cst = arith.constant dense<0.000000e+00> : vector<8x128xf32>
    %3 = tpu.matmul %1, %2, %cst {dimension_numbers = #tpu.dot_dimension_numbers<[1], [0], [0], [1], [0, 0, 1, 1], [], []>} : vector<8x128xbf16>, vector<128x128xbf16>, vector<8x128xf32> -> vector<8x128xf32>
    %c0_3 = arith.constant 0 : index
    %c0_4 = arith.constant 0 : index
    %4 = vector.load %arg3[%c0_3, %c0_4] : memref<2x128xf32, #tpu.memory_space<vmem>>, vector<2x128xf32>
    %cst_5 = arith.constant dense<0.000000e+00> : vector<128xf32>
    %5 = vector.multi_reduction <add>, %3, %cst_5 [0] : vector<8x128xf32> to vector<128xf32>
    %6 = vector.shape_cast %5 : vector<128xf32> to vector<1x128xf32>
    %cst_6 = arith.constant 1.250000e-01 : f32
    %7 = vector.broadcast %cst_6 : f32 to vector<1x128xf32>
    %8 = arith.mulf %6, %7 : vector<1x128xf32>
    %9 = vector.broadcast %8 : vector<1x128xf32> to vector<8x128xf32>
    %10 = arith.subf %3, %9 : vector<8x128xf32>
    %11 = arith.mulf %10, %10 : vector<8x128xf32>
    %cst_7 = arith.constant dense<0.000000e+00> : vector<128xf32>
    %12 = vector.multi_reduction <add>, %11, %cst_7 [0] : vector<8x128xf32> to vector<128xf32>
    %13 = vector.shape_cast %12 : vector<128xf32> to vector<1x128xf32>
    %cst_8 = arith.constant 1.250000e-01 : f32
    %14 = vector.broadcast %cst_8 : f32 to vector<1x128xf32>
    %15 = arith.mulf %13, %14 : vector<1x128xf32>
    %16 = vector.extract_strided_slice %4 {offsets = [0, 0], sizes = [1, 128], strides = [1, 1]} : vector<2x128xf32> to vector<1x128xf32>
    %cst_9 = arith.constant 9.99999974E-6 : f32
    %17 = vector.broadcast %cst_9 : f32 to vector<1x128xf32>
    %18 = arith.addf %15, %17 : vector<1x128xf32>
    %19 = math.rsqrt %18 : vector<1x128xf32>
    %20 = arith.mulf %16, %19 : vector<1x128xf32>
    %21 = vector.broadcast %20 : vector<1x128xf32> to vector<8x128xf32>
    %22 = arith.mulf %10, %21 : vector<8x128xf32>
    %23 = vector.extract_strided_slice %4 {offsets = [1, 0], sizes = [1, 128], strides = [1, 1]} : vector<2x128xf32> to vector<1x128xf32>
    %24 = vector.broadcast %23 : vector<1x128xf32> to vector<8x128xf32>
    %25 = arith.addf %22, %24 : vector<8x128xf32>
    %cst_10 = arith.constant 0.000000e+00 : f32
    %26 = vector.broadcast %cst_10 : f32 to vector<8x128xf32>
    %27 = arith.cmpf ogt, %25, %26 : vector<8x128xf32>
    %cst_11 = arith.constant 2.500000e-01 : f32
    %28 = vector.broadcast %cst_11 : f32 to vector<8x128xf32>
    %29 = arith.mulf %28, %25 : vector<8x128xf32>
    %30 = arith.select %27, %25, %29 : vector<8x128xi1>, vector<8x128xf32>
    %31 = arith.truncf %30 : vector<8x128xf32> to vector<8x128xbf16>
    %c0_12 = arith.constant 0 : index
    %c0_13 = arith.constant 0 : index
    %32 = vector.load %arg4[%c0_12, %c0_13] : memref<128x128xbf16, #tpu.memory_space<vmem>>, vector<128x128xbf16>
    %cst_14 = arith.constant dense<0.000000e+00> : vector<8x128xf32>
    %33 = tpu.matmul %31, %32, %cst_14 {dimension_numbers = #tpu.dot_dimension_numbers<[1], [0], [0], [1], [0, 0, 1, 1], [], []>} : vector<8x128xbf16>, vector<128x128xbf16>, vector<8x128xf32> -> vector<8x128xf32>
    %c0_15 = arith.constant 0 : index
    %c0_16 = arith.constant 0 : index
    %34 = vector.load %arg5[%c0_15, %c0_16] : memref<2x128xf32, #tpu.memory_space<vmem>>, vector<2x128xf32>
    %cst_17 = arith.constant dense<0.000000e+00> : vector<128xf32>
    %35 = vector.multi_reduction <add>, %33, %cst_17 [0] : vector<8x128xf32> to vector<128xf32>
    %36 = vector.shape_cast %35 : vector<128xf32> to vector<1x128xf32>
    %cst_18 = arith.constant 1.250000e-01 : f32
    %37 = vector.broadcast %cst_18 : f32 to vector<1x128xf32>
    %38 = arith.mulf %36, %37 : vector<1x128xf32>
    %39 = vector.broadcast %38 : vector<1x128xf32> to vector<8x128xf32>
    %40 = arith.subf %33, %39 : vector<8x128xf32>
    %41 = arith.mulf %40, %40 : vector<8x128xf32>
    %cst_19 = arith.constant dense<0.000000e+00> : vector<128xf32>
    %42 = vector.multi_reduction <add>, %41, %cst_19 [0] : vector<8x128xf32> to vector<128xf32>
    %43 = vector.shape_cast %42 : vector<128xf32> to vector<1x128xf32>
    %cst_20 = arith.constant 1.250000e-01 : f32
    %44 = vector.broadcast %cst_20 : f32 to vector<1x128xf32>
    %45 = arith.mulf %43, %44 : vector<1x128xf32>
    %46 = vector.extract_strided_slice %34 {offsets = [0, 0], sizes = [1, 128], strides = [1, 1]} : vector<2x128xf32> to vector<1x128xf32>
    %cst_21 = arith.constant 9.99999974E-6 : f32
    %47 = vector.broadcast %cst_21 : f32 to vector<1x128xf32>
    %48 = arith.addf %45, %47 : vector<1x128xf32>
    %49 = math.rsqrt %48 : vector<1x128xf32>
    %50 = arith.mulf %46, %49 : vector<1x128xf32>
    %51 = vector.broadcast %50 : vector<1x128xf32> to vector<8x128xf32>
    %52 = arith.mulf %40, %51 : vector<8x128xf32>
    %53 = vector.extract_strided_slice %34 {offsets = [1, 0], sizes = [1, 128], strides = [1, 1]} : vector<2x128xf32> to vector<1x128xf32>
    %54 = vector.broadcast %53 : vector<1x128xf32> to vector<8x128xf32>
    %55 = arith.addf %52, %54 : vector<8x128xf32>
    %c0_22 = arith.constant 0 : index
    %c0_23 = arith.constant 0 : index
    %56 = vector.load %arg6[%c0_22, %c0_23] : memref<8x128xf32, #tpu.memory_space<vmem>>, vector<8x128xf32>
    tpu.vector_store %arg6[%c0_22, %c0_23], %55 {strides = array<i32>} : memref<8x128xf32, #tpu.memory_space<vmem>>, vector<8x128xf32>,
    return
  }
  func.func @transform_0(%arg0: i32) -> (i32, i32) {
    %c0_i32 = arith.constant 0 : i32
    %c0_i32_0 = arith.constant 0 : i32
    %c0_i32_1 = arith.constant 0 : i32
    return %c0_i32, %c0_i32_0 : i32, i32
  }
  func.func @transform_1(%arg0: i32) -> (i32, i32) {
    %c0_i32 = arith.constant 0 : i32
    %c0_i32_0 = arith.constant 0 : i32
    %c0_i32_1 = arith.constant 0 : i32
    return %c0_i32, %c0_i32_0 : i32, i32
  }
  func.func @transform_2(%arg0: i32) -> (i32, i32) {
    %c0_i32 = arith.constant 0 : i32
    %c0_i32_0 = arith.constant 0 : i32
    %c0_i32_1 = arith.constant 0 : i32
    return %c0_i32, %c0_i32_0 : i32, i32
  }
  func.func @transform_3(%arg0: i32) -> (i32, i32) {
    %c0_i32 = arith.constant 0 : i32
    %c0_i32_0 = arith.constant 0 : i32
    %c0_i32_1 = arith.constant 0 : i32
    return %c0_i32, %c0_i32_0 : i32, i32
  }
  func.func @transform_4(%arg0: i32) -> (i32, i32) {
    %c0_i32 = arith.constant 0 : i32
    %c0_i32_0 = arith.constant 0 : i32
    %c0_i32_1 = arith.constant 0 : i32
    return %c0_i32, %c0_i32_0 : i32, i32
  }
  func.func @transform_5(%arg0: i32) -> (i32, i32) {
    %c0_i32 = arith.constant 0 : i32
    %c0_i32_0 = arith.constant 0 : i32
    %c0_i32_1 = arith.constant 0 : i32
    return %c0_i32, %c0_i32_0 : i32, i32
  }
}

</mosaic_0001>

<llo_original>
// kernel: tpu_custom_call.1
$region0: #{tpu_custom_call.1}
  #allocation0 [shape = 'u32[]', space=smem, size = 0x4, offset = 0x4, fixed_abs, tag = 'smem constant byte address 0x4 - core index']
  #allocation1 [shape = 'u32[144,128]{1,0:T(1,128)}', space=vmem, size = 0x12000, scoped, tag = 'internal scratch']
  %s0 = inlined_call_operand.hbm [shape: f32[8,128], index: 0, kind: input, shape index: {}]
  %s1 = inlined_call_operand.hbm [shape: bf16[128,128], index: 1, kind: input, shape index: {}]
  %s2 = inlined_call_operand.vmem [shape: f32[2,128], index: 2, kind: input, shape index: {}]
  %s3 = inlined_call_operand.hbm [shape: bf16[128,128], index: 3, kind: input, shape index: {}]
  %s4 = inlined_call_operand.vmem [shape: f32[2,128], index: 4, kind: input, shape index: {}]
  %s5 = inlined_call_operand.hbm [shape: f32[8,128], index: 5, kind: output, shape index: {}]
  %s6 = sld [smem:[#allocation0]]
  $region42: #{tpu_custom_call.1} parent=0
    _
  %s8 = ssub.s32 1, %s6
  %s9 = scalar_select 0, %s8, %s6
  $region1: #{tpu_custom_call.1} parent=0
    #allocation2 [shape = 'u8[4096]{0}', space=vmem, size = 0x1000, scoped, tag = 'input window, operand 0, single buffered']
    #allocation3 [shape = 's32[1]{0}', space=sflag, size = 0x4, scoped, tag = 'scoped memory for tpu_custom_call.1']
    #allocation4 [shape = 's32[1]{0}', space=sflag, size = 0x4, scoped, tag = 'scoped memory for tpu_custom_call.1']
    #allocation5 [shape = 'u8[32768]{0}', space=vmem, size = 0x8000, scoped, tag = 'input window, operand 1, single buffered']
    #allocation6 [shape = 's32[1]{0}', space=sflag, size = 0x4, scoped, tag = 'scoped memory for tpu_custom_call.1']
    #allocation7 [shape = 'u8[32768]{0}', space=vmem, size = 0x8000, scoped, tag = 'input window, operand 3, single buffered']
    #allocation8 [shape = 'u8[4096]{0}', space=vmem, size = 0x1000, scoped, tag = 'output window, operand 0, single buffered']
    %10 = vsyncpa [#allocation3], 0
    %11 = vsyncpa [#allocation6], 0
    %12 = vsyncpa [#allocation4], 0
    // Predicated region
    $region2: #{tpu_custom_call.1} parent=1 // pred_check
      _
    $region3: #{tpu_custom_call.1} parent=1 // pred_check_branch
      %14 = sbr.rel (0) target = $region5
    $region4: #{tpu_custom_call.1} parent=1 // pred_region
      %s16 = ssub.s32 128, 128
      %17 = vsyncadd [#allocation3], %s16
      %s19 = sshll.u32 [#allocation2], 4
      %s20 = int_to_ptr.vmem [resolvable:$true] %s19
      %22 = dma.hbm_to_vmem [thread:$0]  %s0, 128, %s20, [#allocation3]
    $region5: #{tpu_custom_call.1} parent=1 // pred_fallthru
      _
    // Predicated region
    $region6: #{tpu_custom_call.1} parent=1 // pred_check
      _
    $region7: #{tpu_custom_call.1} parent=1 // pred_check_branch
      %24 = sbr.rel (0) target = $region9
    $region8: #{tpu_custom_call.1} parent=1 // pred_region
      %s26 = ssub.s32 1024, 1024
      %27 = vsyncadd [#allocation6], %s26
      %s28 = sshll.u32 [#allocation5], 4
      %s29 = int_to_ptr.vmem [resolvable:$true] %s28
      %34 = dma.hbm_to_vmem [thread:$0]  %s1, 1024, %s29, [#allocation6], 64, 64, 4
    $region9: #{tpu_custom_call.1} parent=1 // pred_fallthru
      _
    // Predicated region
    $region10: #{tpu_custom_call.1} parent=1 // pred_check
      _
    $region11: #{tpu_custom_call.1} parent=1 // pred_check_branch
      %36 = sbr.rel (0) target = $region13
    $region12: #{tpu_custom_call.1} parent=1 // pred_region
      _
    $region13: #{tpu_custom_call.1} parent=1 // pred_fallthru
      _
    // Predicated region
    $region14: #{tpu_custom_call.1} parent=1 // pred_check
      _
    $region15: #{tpu_custom_call.1} parent=1 // pred_check_branch
      %38 = sbr.rel (0) target = $region17
    $region16: #{tpu_custom_call.1} parent=1 // pred_region
      %s40 = ssub.s32 1024, 1024
      %41 = vsyncadd [#allocation6], %s40
      %s42 = sshll.u32 [#allocation7], 4
      %s43 = int_to_ptr.vmem [resolvable:$true] %s42
      %48 = dma.hbm_to_vmem [thread:$0]  %s3, 1024, %s43, [#allocation6], 64, 64, 4
    $region17: #{tpu_custom_call.1} parent=1 // pred_fallthru
      _
    // Predicated region
    $region18: #{tpu_custom_call.1} parent=1 // pred_check
      _
    $region19: #{tpu_custom_call.1} parent=1 // pred_check_branch
      %50 = sbr.rel (0) target = $region21
    $region20: #{tpu_custom_call.1} parent=1 // pred_region
      _
    $region21: #{tpu_custom_call.1} parent=1 // pred_fallthru
      _
    // Predicated region
    $region22: #{tpu_custom_call.1} parent=1 // pred_check
      _
    $region23: #{tpu_custom_call.1} parent=1 // pred_check_branch
      %52 = sbr.rel (0) target = $region25
    $region24: #{tpu_custom_call.1} parent=1 // pred_region
      %53 = dma.done [#allocation3], 128
    $region25: #{tpu_custom_call.1} parent=1 // pred_fallthru
      _
    // Predicated region
    $region26: #{tpu_custom_call.1} parent=1 // pred_check
      _
    $region27: #{tpu_custom_call.1} parent=1 // pred_check_branch
      %55 = sbr.rel (0) target = $region29
    $region28: #{tpu_custom_call.1} parent=1 // pred_region
      %56 = dma.done [#allocation6], 1024
    $region29: #{tpu_custom_call.1} parent=1 // pred_fallthru
      _
    // Predicated region
    $region30: #{tpu_custom_call.1} parent=1 // pred_check
      _
    $region31: #{tpu_custom_call.1} parent=1 // pred_check_branch
      %58 = sbr.rel (0) target = $region33
    $region32: #{tpu_custom_call.1} parent=1 // pred_region
      %59 = dma.done [#allocation6], 1024
    $region33: #{tpu_custom_call.1} parent=1 // pred_fallthru
      _
    %v61 = vld [vmem:[#allocation2] sm:$0xff]
    %v62 = vpack.c.bf16 %v61, %v61
    %v63 = vld [vmem:[#allocation5] sm:$0xf]
    %v64 = vld [vmem:[#allocation5 + $0x4] sm:$0xf]
    %v65 = vld [vmem:[#allocation5 + $0x8] sm:$0xf]
    %v66 = vld [vmem:[#allocation5 + $0xc] sm:$0xf]
    %v67 = vld [vmem:[#allocation5 + $0x10] sm:$0xf]
    %v68 = vld [vmem:[#allocation5 + $0x14] sm:$0xf]
    %v69 = vld [vmem:[#allocation5 + $0x18] sm:$0xf]
    %v70 = vld [vmem:[#allocation5 + $0x1c] sm:$0xf]
    %v71 = vld [vmem:[#allocation5 + $0x20] sm:$0xf]
    %v72 = vld [vmem:[#allocation5 + $0x24] sm:$0xf]
    %v73 = vld [vmem:[#allocation5 + $0x28] sm:$0xf]
    %v74 = vld [vmem:[#allocation5 + $0x2c] sm:$0xf]
    %v75 = vld [vmem:[#allocation5 + $0x30] sm:$0xf]
    %v76 = vld [vmem:[#allocation5 + $0x34] sm:$0xf]
    %v77 = vld [vmem:[#allocation5 + $0x38] sm:$0xf]
    %v78 = vld [vmem:[#allocation5 + $0x3c] sm:$0xf]
    %v95 = vunpack.c.l.b16 %v63
    %v96 = vunpack.c.l.b16 %v64
    %v97 = vunpack.c.l.b16 %v65
    %v98 = vunpack.c.l.b16 %v66
    %v99 = vunpack.c.l.b16 %v67
    %v100 = vunpack.c.l.b16 %v68
    %v101 = vunpack.c.l.b16 %v69
    %v102 = vunpack.c.l.b16 %v70
    %v103 = vunpack.c.l.b16 %v71
    %v104 = vunpack.c.l.b16 %v72
    %v105 = vunpack.c.l.b16 %v73
    %v106 = vunpack.c.l.b16 %v74
    %v107 = vunpack.c.l.b16 %v75
    %v108 = vunpack.c.l.b16 %v76
    %v109 = vunpack.c.l.b16 %v77
    %v110 = vunpack.c.l.b16 %v78
    %v111 = vpack.c.b16 %v96, %v95
    %v112 = vpack.c.b16 %v98, %v97
    %v113 = vpack.c.b16 %v100, %v99
    %v114 = vpack.c.b16 %v102, %v101
    %v115 = vpack.c.b16 %v104, %v103
    %v116 = vpack.c.b16 %v106, %v105
    %v117 = vpack.c.b16 %v108, %v107
    %v118 = vpack.c.b16 %v110, %v109
    %127 = vmatprep.subr.bf16.mxu0 0
    %128 = vmatpush1.bf16.msra.mxu0 %v111
    %129 = vmatprep.subr.bf16.mxu0 0
    %130 = vmatpush1.bf16.msra.mxu0 %v112
    %131 = vmatprep.subr.bf16.mxu0 0
    %132 = vmatpush1.bf16.msra.mxu0 %v113
    %133 = vmatprep.subr.bf16.mxu0 0
    %134 = vmatpush1.bf16.msra.mxu0 %v114
    %135 = vmatprep.subr.bf16.mxu0 0
    %136 = vmatpush1.bf16.msra.mxu0 %v115
    %137 = vmatprep.subr.bf16.mxu0 0
    %138 = vmatpush1.bf16.msra.mxu0 %v116
    %139 = vmatprep.subr.bf16.mxu0 0
    %140 = vmatpush1.bf16.msra.mxu0 %v117
    %141 = vmatprep.subr.bf16.mxu0 0
    %142 = vmatpush1.bf16.msra.mxu0 %v118
    %143 = vmatprep.subr.bf16.mxu0 0
    %144 = vmatpush1.bf16.msra.mxu0 0
    %145 = vmatprep.subr.bf16.mxu0 0
    %146 = vmatpush1.bf16.msra.mxu0 0
    %147 = vmatprep.subr.bf16.mxu0 0
    %148 = vmatpush1.bf16.msra.mxu0 0
    %149 = vmatprep.subr.bf16.mxu0 0
    %150 = vmatpush1.bf16.msra.mxu0 0
    %151 = vmatprep.subr.bf16.mxu0 0
    %152 = vmatpush1.bf16.msra.mxu0 0
    %153 = vmatprep.subr.bf16.mxu0 0
    %154 = vmatpush1.bf16.msra.mxu0 0
    %155 = vmatprep.subr.bf16.mxu0 0
    %156 = vmatpush1.bf16.msra.mxu0 0
    %157 = vmatprep.subr.bf16.mxu0 0
    %158 = vmatpush1.bf16.msra.mxu0 0
    %159 = vmatprep.mubr.bf16.mxu0 0
    %160 = vmatmul.mubr.bf16.gmra.mrb[0].mxu0 %v62
    %v161 = vpop.f32.mrb[0].mxu0
    %v162 = vadd.f32 0.0, %v161
    %v163 = vpop.f32.mrb[0].mxu0
    %v164 = vpop.f32.mrb[0].mxu0
    %v165 = vpop.f32.mrb[0].mxu0
    %166 = vdwg.mxu0
    %v167 = vld [vmem:[%s2] sm:$0x3]
    %v168 = vrot.slane %v162, 4
    %v169 = vadd.f32 %v162, %v168
    %v170 = vrot.slane %v169, 2
    %v171 = vadd.f32 %v169, %v170
    %v172 = vrot.slane %v171, 1
    %v173 = vadd.f32 %v171, %v172
    %v174 = vmul.f32 %v173, 0.125
    %v175 = vsub.f32 %v162, %v174
    %v176 = vmul.f32 %v175, %v175
    %v177 = vrot.slane %v176, 4
    %v178 = vadd.f32 %v176, %v177
    %v179 = vrot.slane %v178, 2
    %v180 = vadd.f32 %v178, %v179
    %v181 = vrot.slane %v180, 1
    %v182 = vadd.f32 %v180, %v181
    %v183 = vmul.f32 %v182, 0.125
    %v184 = vadd.f32 %v183, 1e-05
    %v185 = vrsqrt.pop %v184
    %v186 = vmul.f32 %v167, %v185
    %v187 = vlaneseq
    %v188 = vshrl.u32 %v187, 7
    %v189 = vsub.s32 0, %v188
    %v190 = vrot.slane %v186, %v189
    %v191 = vmul.f32 %v175, %v190
    %v192 = vlaneseq
    %v193 = vshrl.u32 %v192, 7
    %v194 = vsub.s32 1, %v193
    %v195 = vrot.slane %v167, %v194
    %v196 = vadd.f32 %v191, %v195
    %vm197 = vcmp.gt.f32.partialorder %v196, 0.0
    %v198 = vmul.f32 %v196, 0.25
    %v199 = vsel %vm197, %v196, %v198
    %v200 = vpack.c.bf16 %v199, %v199
    %v201 = vld [vmem:[#allocation7] sm:$0xf]
    %v202 = vld [vmem:[#allocation7 + $0x4] sm:$0xf]
    %v203 = vld [vmem:[#allocation7 + $0x8] sm:$0xf]
    %v204 = vld [vmem:[#allocation7 + $0xc] sm:$0xf]
    %v205 = vld [vmem:[#allocation7 + $0x10] sm:$0xf]
    %v206 = vld [vmem:[#allocation7 + $0x14] sm:$0xf]
    %v207 = vld [vmem:[#allocation7 + $0x18] sm:$0xf]
    %v208 = vld [vmem:[#allocation7 + $0x1c] sm:$0xf]
    %v209 = vld [vmem:[#allocation7 + $0x20] sm:$0xf]
    %v210 = vld [vmem:[#allocation7 + $0x24] sm:$0xf]
    %v211 = vld [vmem:[#allocation7 + $0x28] sm:$0xf]
    %v212 = vld [vmem:[#allocation7 + $0x2c] sm:$0xf]
    %v213 = vld [vmem:[#allocation7 + $0x30] sm:$0xf]
    %v214 = vld [vmem:[#allocation7 + $0x34] sm:$0xf]
    %v215 = vld [vmem:[#allocation7 + $0x38] sm:$0xf]
    %v216 = vld [vmem:[#allocation7 + $0x3c] sm:$0xf]
    %v233 = vunpack.c.l.b16 %v201
    %v234 = vunpack.c.l.b16 %v202
    %v235 = vunpack.c.l.b16 %v203
    %v236 = vunpack.c.l.b16 %v204
    %v237 = vunpack.c.l.b16 %v205
    %v238 = vunpack.c.l.b16 %v206
    %v239 = vunpack.c.l.b16 %v207
    %v240 = vunpack.c.l.b16 %v208
    %v241 = vunpack.c.l.b16 %v209
    %v242 = vunpack.c.l.b16 %v210
    %v243 = vunpack.c.l.b16 %v211
    %v244 = vunpack.c.l.b16 %v212
    %v245 = vunpack.c.l.b16 %v213
    %v246 = vunpack.c.l.b16 %v214
    %v247 = vunpack.c.l.b16 %v215
    %v248 = vunpack.c.l.b16 %v216
    %v249 = vpack.c.b16 %v234, %v233
    %v250 = vpack.c.b16 %v236, %v235
    %v251 = vpack.c.b16 %v238, %v237
    %v252 = vpack.c.b16 %v240, %v239
    %v253 = vpack.c.b16 %v242, %v241
    %v254 = vpack.c.b16 %v244, %v243
    %v255 = vpack.c.b16 %v246, %v245
    %v256 = vpack.c.b16 %v248, %v247
    %265 = vmatprep.subr.bf16.mxu0 0
    %266 = vmatpush1.bf16.msra.mxu0 %v249
    %267 = vmatprep.subr.bf16.mxu0 0
    %268 = vmatpush1.bf16.msra.mxu0 %v250
    %269 = vmatprep.subr.bf16.mxu0 0
    %270 = vmatpush1.bf16.msra.mxu0 %v251
    %271 = vmatprep.subr.bf16.mxu0 0
    %272 = vmatpush1.bf16.msra.mxu0 %v252
    %273 = vmatprep.subr.bf16.mxu0 0
    %274 = vmatpush1.bf16.msra.mxu0 %v253
    %275 = vmatprep.subr.bf16.mxu0 0
    %276 = vmatpush1.bf16.msra.mxu0 %v254
    %277 = vmatprep.subr.bf16.mxu0 0
    %278 = vmatpush1.bf16.msra.mxu0 %v255
    %279 = vmatprep.subr.bf16.mxu0 0
    %280 = vmatpush1.bf16.msra.mxu0 %v256
    %281 = vmatprep.subr.bf16.mxu0 0
    %282 = vmatpush1.bf16.msra.mxu0 0
    %283 = vmatprep.subr.bf16.mxu0 0
    %284 = vmatpush1.bf16.msra.mxu0 0
    %285 = vmatprep.subr.bf16.mxu0 0
    %286 = vmatpush1.bf16.msra.mxu0 0
    %287 = vmatprep.subr.bf16.mxu0 0
    %288 = vmatpush1.bf16.msra.mxu0 0
    %289 = vmatprep.subr.bf16.mxu0 0
    %290 = vmatpush1.bf16.msra.mxu0 0
    %291 = vmatprep.subr.bf16.mxu0 0
    %292 = vmatpush1.bf16.msra.mxu0 0
    %293 = vmatprep.subr.bf16.mxu0 0
    %294 = vmatpush1.bf16.msra.mxu0 0
    %295 = vmatprep.subr.bf16.mxu0 0
    %296 = vmatpush1.bf16.msra.mxu0 0
    %297 = vmatprep.mubr.bf16.mxu0 0
    %298 = vmatmul.mubr.bf16.gmra.mrb[0].mxu0 %v200
    %v299 = vpop.f32.mrb[0].mxu0
    %v300 = vadd.f32 0.0, %v299
    %v301 = vpop.f32.mrb[0].mxu0
    %v302 = vpop.f32.mrb[0].mxu0
    %v303 = vpop.f32.mrb[0].mxu0
    %304 = vdwg.mxu0
    %v305 = vld [vmem:[%s4] sm:$0x3]
    %v306 = vrot.slane %v300, 4
    %v307 = vadd.f32 %v300, %v306
    %v308 = vrot.slane %v307, 2
    %v309 = vadd.f32 %v307, %v308
    %v310 = vrot.slane %v309, 1
    %v311 = vadd.f32 %v309, %v310
    %v312 = vmul.f32 %v311, 0.125
    %v313 = vsub.f32 %v300, %v312
    %v314 = vmul.f32 %v313, %v313
    %v315 = vrot.slane %v314, 4
    %v316 = vadd.f32 %v314, %v315
    %v317 = vrot.slane %v316, 2
    %v318 = vadd.f32 %v316, %v317
    %v319 = vrot.slane %v318, 1
    %v320 = vadd.f32 %v318, %v319
    %v321 = vmul.f32 %v320, 0.125
    %v322 = vadd.f32 %v321, 1e-05
    %v323 = vrsqrt.pop %v322
    %v324 = vmul.f32 %v305, %v323
    %v325 = vlaneseq
    %v326 = vshrl.u32 %v325, 7
    %v327 = vsub.s32 0, %v326
    %v328 = vrot.slane %v324, %v327
    %v329 = vmul.f32 %v313, %v328
    %v330 = vlaneseq
    %v331 = vshrl.u32 %v330, 7
    %v332 = vsub.s32 1, %v331
    %v333 = vrot.slane %v305, %v332
    %v334 = vadd.f32 %v329, %v333
    %335 = vst [vmem:[#allocation8] sm:$0xff] %v334
    // Predicated region
    $region34: #{tpu_custom_call.1} parent=1 // pred_check
      _
    $region35: #{tpu_custom_call.1} parent=1 // pred_check_branch
      %337 = sbr.rel (0) target = $region37
    $region36: #{tpu_custom_call.1} parent=1 // pred_region
      %s339 = ssub.s32 128, 128
      %340 = vsyncadd [#allocation4], %s339
      %s342 = sshll.u32 [#allocation8], 4
      %s343 = int_to_ptr.vmem [resolvable:$true] %s342
      %345 = dma.vmem_to_hbm [thread:$0]  %s343, 128, %s5, [#allocation4]
    $region37: #{tpu_custom_call.1} parent=1 // pred_fallthru
      _
    // Predicated region
    $region38: #{tpu_custom_call.1} parent=1 // pred_check
      _
    $region39: #{tpu_custom_call.1} parent=1 // pred_check_branch
      %347 = sbr.rel (0) target = $region41
    $region40: #{tpu_custom_call.1} parent=1 // pred_region
      %348 = dma.done [#allocation4], 128
    $region41: #{tpu_custom_call.1} parent=1 // pred_fallthru
      _
    %349 = vsyncpa [#allocation3], 1
    %350 = vsyncpa [#allocation6], 1
    %351 = vsyncpa [#allocation4], 1

</llo_original>
